<compile_context>
chip_gen: v7x
topology: tpu7x:2x2x1
jax: 0.10.0
libtpu: 0.0.40
codegen_flags: <defaults>
</compile_context>

<pallas_src>
import functools

import jax
import jax.numpy as jnp
from jax.experimental import pallas as pl
from jax.experimental.pallas import tpu as pltpu


# ---------------------------------------------------------------------------
# Kernels
# ---------------------------------------------------------------------------
def _epilogue(o, activation_type, out_valid):
    """Final activation in f32.  `o` is (TB, Out_p)."""
    if activation_type == "sigmoid":
        return jax.nn.sigmoid(o)
    if activation_type == "softmax":
        if out_valid < o.shape[-1]:
            # Mask padded output columns so they do not contaminate the softmax.
            col = jax.lax.broadcasted_iota(jnp.int32, o.shape, dimension=1)
            o = jnp.where(col < out_valid, o, -1e30)  # Python literal -> no captured const
        m = jnp.max(o, axis=-1, keepdims=True)
        e = jnp.exp(o - m)
        denom = jnp.sum(e, axis=-1, keepdims=True)
        return e * pl.reciprocal(denom, approx=True)
    return o  # "linear"


def _ffnn_kernel_resident(x_ref, w1_ref, b1_ref, w2_ref, b2_ref, out_ref, *,
                          activation_type, out_valid):
    x = x_ref[...].astype(jnp.bfloat16)
    h = jnp.dot(x, w1_ref[...], preferred_element_type=jnp.float32)
    h = jnp.maximum(h + b1_ref[...], 0.0)                       # ReLU
    o = jnp.dot(h.astype(w2_ref.dtype), w2_ref[...],
                preferred_element_type=jnp.float32)
    o = o + b2_ref[...]
    out_ref[...] = _epilogue(o, activation_type, out_valid).astype(out_ref.dtype)


def _ffnn_kernel_htiled(x_ref, w1_ref, b1_ref, w2_ref, b2_ref, out_ref, acc_ref, *,
                        activation_type, out_valid):
    hk = pl.program_id(1)

    @pl.when(hk == 0)
    def _init():
        acc_ref[...] = jnp.zeros_like(acc_ref)

    x = x_ref[...].astype(jnp.bfloat16)
    h = jnp.dot(x, w1_ref[...], preferred_element_type=jnp.float32)
    h = jnp.maximum(h + b1_ref[...], 0.0)                       # ReLU (per H-tile is exact)
    acc_ref[...] += jnp.dot(h.astype(w2_ref.dtype), w2_ref[...],
                            preferred_element_type=jnp.float32)

    @pl.when(hk == pl.num_programs(1) - 1)
    def _finalize():
        o = acc_ref[...] + b2_ref[...]
        out_ref[...] = _epilogue(o, activation_type, out_valid).astype(out_ref.dtype)


# ---------------------------------------------------------------------------
# Host-side helpers
# ---------------------------------------------------------------------------
def _round_up(v, m):
    return ((v + m - 1) // m) * m


def _pad2(a, shape):
    return jnp.pad(a, [(0, s - d) for d, s in zip(a.shape, shape)])


def _vmem_cap_bytes():
    """~0.75x physical VMEM (generation-aware: ~48 MiB on v7x, ~96 MiB on v5e/v6e)."""
    try:
        phys = int(pltpu.get_tpu_info().vmem_capacity_bytes)
    except Exception:
        phys = 64 * 1024 * 1024  # conservative default (v7x-sized)
    return max(32 * 1024 * 1024, int(phys * 0.75))


def _pick_divisor_tile(total, target):
    """Largest multiple of 128 that divides `total` (a multiple of 128) and is <= target."""
    n = total // 128
    best = 1
    for d in range(1, n + 1):
        if n % d == 0 and d * 128 <= target:
            best = d
    return best * 128


def prepare_params(w1_t, b1, w2_t, b2):
    """Pad/cast the weights once (reuse across calls).  w1_t: (In,H); w2_t: (H,Out)."""
    In, H = w1_t.shape
    Out = w2_t.shape[1]
    In_p, H_p, Out_p = _round_up(In, 128), _round_up(H, 128), _round_up(Out, 128)
    return {
        "w1": _pad2(w1_t, (In_p, H_p)).astype(jnp.bfloat16),
        "b1": _pad2(b1.reshape(1, H), (1, H_p)).astype(jnp.float32),
        "w2": _pad2(w2_t, (H_p, Out_p)).astype(jnp.bfloat16),
        "b2": _pad2(b2.reshape(1, Out), (1, Out_p)).astype(jnp.float32),
        "dims": (In, H, Out, In_p, H_p, Out_p),
    }


def ffnn_forward(x, params, activation_type, *, tb=512, th=512, force_htiled=False):
    """x: (B, In) f32; params from prepare_params; returns (B, Out) f32."""
    if activation_type not in ("linear", "sigmoid", "softmax"):
        raise ValueError(
            "Invalid activation type. Choose from 'linear', 'sigmoid', 'softmax'.")

    In, H, Out, In_p, H_p, Out_p = params["dims"]
    B = x.shape[0]
    assert x.shape[1] == In

    # ---- batch tiling: padding < one tile, 16-row aligned (bf16 sublanes),
    #      and >=2 grid steps for larger batches (v7x dual TensorCore).
    n_tiles = max(pl.cdiv(B, tb), 2 if B >= 64 else 1)
    TB = _round_up(pl.cdiv(B, n_tiles), 16)
    B_p = _round_up(B, TB)
    n_tiles = B_p // TB

    # ---- x: skip the wrapper pad/cast HBM round trip when no padding is needed
    #      (kernel casts the f32 VMEM tile to bf16); otherwise pad+cast once.
    if B_p == B and In_p == In:
        x_p = x
    else:
        x_p = _pad2(x, (B_p, In_p)).astype(jnp.bfloat16)
    x_bytes = x_p.dtype.itemsize

    w1, b1, w2, b2 = params["w1"], params["b1"], params["w2"], params["b2"]

    cap = _vmem_cap_bytes()
    weight_bytes = (In_p * H_p + H_p * Out_p) * 2 + (H_p + Out_p) * 4
    resident_need = (weight_bytes                     # residents (single-buffered)
                     + 2 * TB * In_p * x_bytes        # x, double-buffered
                     + 2 * TB * Out_p * 4             # out, double-buffered
                     + TB * H_p * 4)                  # f32 hidden intermediate
    use_htiled = force_htiled or resident_need > int(0.8 * cap)

    flops = 2 * B_p * In_p * H_p + 2 * B_p * H_p * Out_p
    transcendentals = B_p * Out_p if activation_type in ("sigmoid", "softmax") else 0
    bytes_accessed = (x_p.size * x_bytes + w1.size * 2 + w2.size * 2
                      + b1.size * 4 + b2.size * 4 + B_p * Out_p * 4)
    cost = pl.CostEstimate(flops=flops, transcendentals=transcendentals,
                           bytes_accessed=bytes_accessed)

    def run(single_buffer):
        def res_spec(shape, index_map):
            # Constant-index residents: 1-deep buffering halves their VMEM footprint.
            if single_buffer:
                try:
                    return pl.BlockSpec(shape, index_map, pipeline_mode=pl.Buffered(1))
                except Exception:
                    pass
            return pl.BlockSpec(shape, index_map)

        if not use_htiled:
            kernel = functools.partial(_ffnn_kernel_resident,
                                       activation_type=activation_type,
                                       out_valid=Out)
            vmem_limit = max(32 * 1024 * 1024,
                             min(int(resident_need * 1.5) + (4 << 20), cap))
            return pl.pallas_call(
                kernel,
                out_shape=jax.ShapeDtypeStruct((B_p, Out_p), jnp.float32),
                grid_spec=pltpu.PrefetchScalarGridSpec(
                    num_scalar_prefetch=0,
                    grid=(n_tiles,),
                    in_specs=[
                        pl.BlockSpec((TB, In_p), lambda i: (i, 0)),    # x: batch tiled
                        res_spec((In_p, H_p), lambda i: (0, 0)),       # W1 resident
                        res_spec((1, H_p), lambda i: (0, 0)),          # b1 resident
                        res_spec((H_p, Out_p), lambda i: (0, 0)),      # W2 resident
                        res_spec((1, Out_p), lambda i: (0, 0)),        # b2 resident
                    ],
                    out_specs=pl.BlockSpec((TB, Out_p), lambda i: (i, 0)),
                ),
                compiler_params=pltpu.CompilerParams(
                    dimension_semantics=("parallel",),
                    vmem_limit_bytes=vmem_limit,
                ),
                cost_estimate=cost,
            )(x_p, w1, b1, w2, b2)

        # ---- H-tiled accumulator path (weights do not fit resident in VMEM) ----
        TH = _pick_divisor_tile(H_p, th)
        nh = H_p // TH
        kernel = functools.partial(_ffnn_kernel_htiled,
                                   activation_type=activation_type,
                                   out_valid=Out)
        htiled_need = (2 * TB * In_p * x_bytes
                       + 2 * (In_p * TH + TH * Out_p) * 2
                       + 2 * (TH + Out_p) * 4
                       + 2 * TB * Out_p * 4
                       + TB * Out_p * 4            # f32 accumulator scratch
                       + TB * TH * 4)              # f32 hidden tile intermediate
        vmem_limit = max(32 * 1024 * 1024,
                         min(int(htiled_need * 1.5) + (4 << 20), cap))
        return pl.pallas_call(
            kernel,
            out_shape=jax.ShapeDtypeStruct((B_p, Out_p), jnp.float32),
            grid_spec=pltpu.PrefetchScalarGridSpec(
                num_scalar_prefetch=0,
                grid=(n_tiles, nh),                 # H innermost ("arbitrary")
                in_specs=[
                    pl.BlockSpec((TB, In_p), lambda i, h: (i, 0)),
                    pl.BlockSpec((In_p, TH), lambda i, h: (0, h)),
                    pl.BlockSpec((1, TH), lambda i, h: (0, h)),
                    pl.BlockSpec((TH, Out_p), lambda i, h: (h, 0)),
                    res_spec((1, Out_p), lambda i, h: (0, 0)),
                ],
                out_specs=pl.BlockSpec((TB, Out_p), lambda i, h: (i, 0)),
                scratch_shapes=[pltpu.VMEM((TB, Out_p), jnp.float32)],
            ),
            compiler_params=pltpu.CompilerParams(
                dimension_semantics=("parallel", "arbitrary"),
                vmem_limit_bytes=vmem_limit,
            ),
            cost_estimate=cost,
        )(x_p, w1, b1, w2, b2)

    # Prefer single-buffered residents; fall back to default double-buffering
    # if this JAX build rejects pipeline_mode / Buffered(1).
    try:
        out_p = run(single_buffer=True)
    except Exception:
        out_p = run(single_buffer=False)

    return out_p[:B, :Out]


# ---------------------------------------------------------------------------
# Reference / init (glue)
# ---------------------------------------------------------------------------
def init_params(key, input_size, hidden_size, output_size):
    """Deterministic init mimicking nn.Linear (uniform(-1/sqrt(fan_in), 1/sqrt(fan_in)))."""
    k1, k2, k3, k4 = jax.random.split(key, 4)
    bound1 = 1.0 / (input_size ** 0.5)
    bound2 = 1.0 / (hidden_size ** 0.5)
    w1 = jax.random.uniform(k1, (hidden_size, input_size), jnp.float32, -bound1, bound1)
    b1 = jax.random.uniform(k2, (hidden_size,), jnp.float32, -bound1, bound1)
    w2 = jax.random.uniform(k3, (output_size, hidden_size), jnp.float32, -bound2, bound2)
    b2 = jax.random.uniform(k4, (output_size,), jnp.float32, -bound2, bound2)
    return w1.T, b1, w2.T, b2


def _reference(x, w1_t, b1, w2_t, b2, activation_type):
    ref = jnp.maximum(x @ w1_t + b1, 0.0) @ w2_t + b2
    if activation_type == "sigmoid":
        ref = jax.nn.sigmoid(ref)
    elif activation_type == "softmax":
        ref = jax.nn.softmax(ref, axis=1)
    return ref


if __name__ == "__main__":
    key = jax.random.PRNGKey(0)
    ok = True

    # Config 1: small shapes, resident-weights fast path, all three activations.
    input_size, hidden_size, output_size, batch = 32, 64, 16, 8
    kx, kp = jax.random.split(key)
    x = jax.random.normal(kx, (batch, input_size), jnp.float32)
    w1_t, b1, w2_t, b2 = init_params(kp, input_size, hidden_size, output_size)
    params = prepare_params(w1_t, b1, w2_t, b2)
    for activation_type in ("linear", "sigmoid", "softmax"):
        out = jax.block_until_ready(ffnn_forward(x, params, activation_type))
        ref = _reference(x, w1_t, b1, w2_t, b2, activation_type)
        assert out.shape == (batch, output_size)
        # bf16 MXU inputs + approx reciprocal => loosened tolerance vs f32 ref.
        ok &= bool(jnp.allclose(out, ref, atol=2e-2, rtol=2e-2))

    # Config 2: awkward (non-aligned) sizes, forced H-tiled accumulator path.
    input_size, hidden_size, output_size, batch = 48, 384, 24, 40
    kx2, kp2 = jax.random.split(kp)
    x2 = jax.random.normal(kx2, (batch, input_size), jnp.float32)
    w1_t2, b12, w2_t2, b22 = init_params(kp2, input_size, hidden_size, output_size)
    params2 = prepare_params(w1_t2, b12, w2_t2, b22)
    out2 = jax.block_until_ready(
        ffnn_forward(x2, params2, "softmax", th=128, force_htiled=True))
    ref2 = _reference(x2, w1_t2, b12, w2_t2, b22, "softmax")
    assert out2.shape == (batch, output_size)
    ok &= bool(jnp.allclose(out2, ref2, atol=2e-2, rtol=2e-2))

    assert ok
    print("KERNEL_OK")
</pallas_src>

<mosaic_0001>
module attributes {stable_mosaic.version = 11 : i64} {
  func.func @_ffnn_kernel_resident(%arg0: i32, %arg1: memref<16x128xbf16, #tpu.memory_space<vmem>>, %arg2: memref<128x128xbf16, #tpu.memory_space<vmem>>, %arg3: memref<1x128xf32, #tpu.memory_space<vmem>>, %arg4: memref<128x128xbf16, #tpu.memory_space<vmem>>, %arg5: memref<1x128xf32, #tpu.memory_space<vmem>>, %arg6: memref<16x128xf32, #tpu.memory_space<vmem>>) attributes {dimension_semantics = [#tpu.dimension_semantics<parallel>], iteration_bounds = array<i64: 1>, scalar_prefetch = 0 : i64, scratch_operands = 0 : i64, tpu.core_type = #tpu.core_type<tc>, window_params = [{transform_indices = @transform_0, window_bounds = array<i64: 16, 128>}, {pipeline_mode = #tpu.pipeline_mode<synchronous>, transform_indices = @transform_1, window_bounds = array<i64: 128, 128>}, {pipeline_mode = #tpu.pipeline_mode<synchronous>, transform_indices = @transform_2, window_bounds = array<i64: 1, 128>}, {pipeline_mode = #tpu.pipeline_mode<synchronous>, transform_indices = @transform_3, window_bounds = array<i64: 128, 128>}, {pipeline_mode = #tpu.pipeline_mode<synchronous>, transform_indices = @transform_4, window_bounds = array<i64: 1, 128>}, {transform_indices = @transform_5, window_bounds = array<i64: 16, 128>}]} {
    %c0 = arith.constant 0 : index
    %c0_0 = arith.constant 0 : index
    %0 = vector.load %arg1[%c0, %c0_0] : memref<16x128xbf16, #tpu.memory_space<vmem>>, vector<16x128xbf16>
    %c0_1 = arith.constant 0 : index
    %c0_2 = arith.constant 0 : index
    %1 = vector.load %arg2[%c0_1, %c0_2] : memref<128x128xbf16, #tpu.memory_space<vmem>>, vector<128x128xbf16>
    %cst = arith.constant dense<0.000000e+00> : vector<16x128xf32>
    %2 = tpu.matmul %0, %1, %cst {dimension_numbers = #tpu.dot_dimension_numbers<[1], [0], [0], [1], [0, 0, 1, 1], [], []>} : vector<16x128xbf16>, vector<128x128xbf16>, vector<16x128xf32> -> vector<16x128xf32>
    %c0_3 = arith.constant 0 : index
    %c0_4 = arith.constant 0 : index
    %3 = vector.load %arg3[%c0_3, %c0_4] : memref<1x128xf32, #tpu.memory_space<vmem>>, vector<1x128xf32>
    %4 = vector.broadcast %3 : vector<1x128xf32> to vector<16x128xf32>
    %5 = arith.addf %2, %4 : vector<16x128xf32>
    %cst_5 = arith.constant 0.000000e+00 : f32
    %6 = vector.broadcast %cst_5 : f32 to vector<16x128xf32>
    %7 = arith.maximumf %5, %6 : vector<16x128xf32>
    %8 = arith.truncf %7 : vector<16x128xf32> to vector<16x128xbf16>
    %c0_6 = arith.constant 0 : index
    %c0_7 = arith.constant 0 : index
    %9 = vector.load %arg4[%c0_6, %c0_7] : memref<128x128xbf16, #tpu.memory_space<vmem>>, vector<128x128xbf16>
    %cst_8 = arith.constant dense<0.000000e+00> : vector<16x128xf32>
    %10 = tpu.matmul %8, %9, %cst_8 {dimension_numbers = #tpu.dot_dimension_numbers<[1], [0], [0], [1], [0, 0, 1, 1], [], []>} : vector<16x128xbf16>, vector<128x128xbf16>, vector<16x128xf32> -> vector<16x128xf32>
    %c0_9 = arith.constant 0 : index
    %c0_10 = arith.constant 0 : index
    %11 = vector.load %arg5[%c0_9, %c0_10] : memref<1x128xf32, #tpu.memory_space<vmem>>, vector<1x128xf32>
    %12 = vector.broadcast %11 : vector<1x128xf32> to vector<16x128xf32>
    %13 = arith.addf %10, %12 : vector<16x128xf32>
    %c0_11 = arith.constant 0 : index
    %c0_12 = arith.constant 0 : index
    %14 = vector.load %arg6[%c0_11, %c0_12] : memref<16x128xf32, #tpu.memory_space<vmem>>, vector<16x128xf32>
    tpu.vector_store %arg6[%c0_11, %c0_12], %13 {strides = array<i32>} : memref<16x128xf32, #tpu.memory_space<vmem>>, vector<16x128xf32>,
    return
  }
  func.func @transform_0(%arg0: i32) -> (i32, i32) {
    %c0_i32 = arith.constant 0 : i32
    %c0_i32_0 = arith.constant 0 : i32
    return %arg0, %c0_i32 : i32, i32
  }
  func.func @transform_1(%arg0: i32) -> (i32, i32) {
    %c0_i32 = arith.constant 0 : i32
    %c0_i32_0 = arith.constant 0 : i32
    %c0_i32_1 = arith.constant 0 : i32
    return %c0_i32, %c0_i32_0 : i32, i32
  }
  func.func @transform_2(%arg0: i32) -> (i32, i32) {
    %c0_i32 = arith.constant 0 : i32
    %c0_i32_0 = arith.constant 0 : i32
    %c0_i32_1 = arith.constant 0 : i32
    return %c0_i32, %c0_i32_0 : i32, i32
  }
  func.func @transform_3(%arg0: i32) -> (i32, i32) {
    %c0_i32 = arith.constant 0 : i32
    %c0_i32_0 = arith.constant 0 : i32
    %c0_i32_1 = arith.constant 0 : i32
    return %c0_i32, %c0_i32_0 : i32, i32
  }
  func.func @transform_4(%arg0: i32) -> (i32, i32) {
    %c0_i32 = arith.constant 0 : i32
    %c0_i32_0 = arith.constant 0 : i32
    %c0_i32_1 = arith.constant 0 : i32
    return %c0_i32, %c0_i32_0 : i32, i32
  }
  func.func @transform_5(%arg0: i32) -> (i32, i32) {
    %c0_i32 = arith.constant 0 : i32
    %c0_i32_0 = arith.constant 0 : i32
    return %arg0, %c0_i32 : i32, i32
  }
}

module attributes {stable_mosaic.version = 11 : i64} {
  func.func @_ffnn_kernel_resident(%arg0: i32, %arg1: memref<16x128xbf16, #tpu.memory_space<vmem>>, %arg2: memref<128x128xbf16, #tpu.memory_space<vmem>>, %arg3: memref<1x128xf32, #tpu.memory_space<vmem>>, %arg4: memref<128x128xbf16, #tpu.memory_space<vmem>>, %arg5: memref<1x128xf32, #tpu.memory_space<vmem>>, %arg6: memref<16x128xf32, #tpu.memory_space<vmem>>) attributes {dimension_semantics = [#tpu.dimension_semantics<parallel>], iteration_bounds = array<i64: 1>, scalar_prefetch = 0 : i64, scratch_operands = 0 : i64, tpu.core_type = #tpu.core_type<tc>, window_params = [{transform_indices = @transform_0, window_bounds = array<i64: 16, 128>}, {pipeline_mode = #tpu.pipeline_mode<synchronous>, transform_indices = @transform_1, window_bounds = array<i64: 128, 128>}, {pipeline_mode = #tpu.pipeline_mode<synchronous>, transform_indices = @transform_2, window_bounds = array<i64: 1, 128>}, {pipeline_mode = #tpu.pipeline_mode<synchronous>, transform_indices = @transform_3, window_bounds = array<i64: 128, 128>}, {pipeline_mode = #tpu.pipeline_mode<synchronous>, transform_indices = @transform_4, window_bounds = array<i64: 1, 128>}, {transform_indices = @transform_5, window_bounds = array<i64: 16, 128>}]} {
    %c0 = arith.constant 0 : index
    %c0_0 = arith.constant 0 : index
    %0 = vector.load %arg1[%c0, %c0_0] : memref<16x128xbf16, #tpu.memory_space<vmem>>, vector<16x128xbf16>
    %c0_1 = arith.constant 0 : index
    %c0_2 = arith.constant 0 : index
    %1 = vector.load %arg2[%c0_1, %c0_2] : memref<128x128xbf16, #tpu.memory_space<vmem>>, vector<128x128xbf16>
    %cst = arith.constant dense<0.000000e+00> : vector<16x128xf32>
    %2 = tpu.matmul %0, %1, %cst {dimension_numbers = #tpu.dot_dimension_numbers<[1], [0], [0], [1], [0, 0, 1, 1], [], []>} : vector<16x128xbf16>, vector<128x128xbf16>, vector<16x128xf32> -> vector<16x128xf32>
    %c0_3 = arith.constant 0 : index
    %c0_4 = arith.constant 0 : index
    %3 = vector.load %arg3[%c0_3, %c0_4] : memref<1x128xf32, #tpu.memory_space<vmem>>, vector<1x128xf32>
    %4 = vector.broadcast %3 : vector<1x128xf32> to vector<16x128xf32>
    %5 = arith.addf %2, %4 : vector<16x128xf32>
    %cst_5 = arith.constant 0.000000e+00 : f32
    %6 = vector.broadcast %cst_5 : f32 to vector<16x128xf32>
    %7 = arith.maximumf %5, %6 : vector<16x128xf32>
    %8 = arith.truncf %7 : vector<16x128xf32> to vector<16x128xbf16>
    %c0_6 = arith.constant 0 : index
    %c0_7 = arith.constant 0 : index
    %9 = vector.load %arg4[%c0_6, %c0_7] : memref<128x128xbf16, #tpu.memory_space<vmem>>, vector<128x128xbf16>
    %cst_8 = arith.constant dense<0.000000e+00> : vector<16x128xf32>
    %10 = tpu.matmul %8, %9, %cst_8 {dimension_numbers = #tpu.dot_dimension_numbers<[1], [0], [0], [1], [0, 0, 1, 1], [], []>} : vector<16x128xbf16>, vector<128x128xbf16>, vector<16x128xf32> -> vector<16x128xf32>
    %c0_9 = arith.constant 0 : index
    %c0_10 = arith.constant 0 : index
    %11 = vector.load %arg5[%c0_9, %c0_10] : memref<1x128xf32, #tpu.memory_space<vmem>>, vector<1x128xf32>
    %12 = vector.broadcast %11 : vector<1x128xf32> to vector<16x128xf32>
    %13 = arith.addf %10, %12 : vector<16x128xf32>
    %c0_11 = arith.constant 0 : index
    %c0_12 = arith.constant 0 : index
    %14 = vector.load %arg6[%c0_11, %c0_12] : memref<16x128xf32, #tpu.memory_space<vmem>>, vector<16x128xf32>
    tpu.vector_store %arg6[%c0_11, %c0_12], %13 {strides = array<i32>} : memref<16x128xf32, #tpu.memory_space<vmem>>, vector<16x128xf32>,
    return
  }
  func.func @transform_0(%arg0: i32) -> (i32, i32) {
    %c0_i32 = arith.constant 0 : i32
    %c0_i32_0 = arith.constant 0 : i32
    return %arg0, %c0_i32 : i32, i32
  }
  func.func @transform_1(%arg0: i32) -> (i32, i32) {
    %c0_i32 = arith.constant 0 : i32
    %c0_i32_0 = arith.constant 0 : i32
    %c0_i32_1 = arith.constant 0 : i32
    return %c0_i32, %c0_i32_0 : i32, i32
  }
  func.func @transform_2(%arg0: i32) -> (i32, i32) {
    %c0_i32 = arith.constant 0 : i32
    %c0_i32_0 = arith.constant 0 : i32
    %c0_i32_1 = arith.constant 0 : i32
    return %c0_i32, %c0_i32_0 : i32, i32
  }
  func.func @transform_3(%arg0: i32) -> (i32, i32) {
    %c0_i32 = arith.constant 0 : i32
    %c0_i32_0 = arith.constant 0 : i32
    %c0_i32_1 = arith.constant 0 : i32
    return %c0_i32, %c0_i32_0 : i32, i32
  }
  func.func @transform_4(%arg0: i32) -> (i32, i32) {
    %c0_i32 = arith.constant 0 : i32
    %c0_i32_0 = arith.constant 0 : i32
    %c0_i32_1 = arith.constant 0 : i32
    return %c0_i32, %c0_i32_0 : i32, i32
  }
  func.func @transform_5(%arg0: i32) -> (i32, i32) {
    %c0_i32 = arith.constant 0 : i32
    %c0_i32_0 = arith.constant 0 : i32
    return %arg0, %c0_i32 : i32, i32
  }
}

</mosaic_0001>

<llo_original>
// kernel: tpu_custom_call.1
$region0: #{tpu_custom_call.1}
  #allocation0 [shape = 'u32[]', space=smem, size = 0x4, offset = 0x4, fixed_abs, tag = 'smem constant byte address 0x4 - core index']
  #allocation1 [shape = 'u32[144,128]{1,0:T(1,128)}', space=vmem, size = 0x12000, scoped, tag = 'internal scratch']
  %s0 = inlined_call_operand.hbm [shape: bf16[16,128], index: 0, kind: input, shape index: {}]
  %s1 = inlined_call_operand.hbm [shape: bf16[128,128], index: 1, kind: input, shape index: {}]
  %s2 = inlined_call_operand.vmem [shape: f32[1,128], index: 2, kind: input, shape index: {}]
  %s3 = inlined_call_operand.hbm [shape: bf16[128,128], index: 3, kind: input, shape index: {}]
  %s4 = inlined_call_operand.vmem [shape: f32[1,128], index: 4, kind: input, shape index: {}]
  %s5 = inlined_call_operand.hbm [shape: f32[16,128], index: 5, kind: output, shape index: {}]
  %s6 = sld [smem:[#allocation0]]
  $region42: #{tpu_custom_call.1} parent=0
    _
  %s8 = ssub.s32 1, %s6
  %s9 = scalar_select 0, %s8, %s6
  $region1: #{tpu_custom_call.1} parent=0
    #allocation2 [shape = 'u8[4096]{0}', space=vmem, size = 0x1000, scoped, tag = 'input window, operand 0, single buffered']
    #allocation3 [shape = 's32[1]{0}', space=sflag, size = 0x4, scoped, tag = 'scoped memory for tpu_custom_call.1']
    #allocation4 [shape = 's32[1]{0}', space=sflag, size = 0x4, scoped, tag = 'scoped memory for tpu_custom_call.1']
    #allocation5 [shape = 'u8[32768]{0}', space=vmem, size = 0x8000, scoped, tag = 'input window, operand 1, single buffered']
    #allocation6 [shape = 's32[1]{0}', space=sflag, size = 0x4, scoped, tag = 'scoped memory for tpu_custom_call.1']
    #allocation7 [shape = 'u8[32768]{0}', space=vmem, size = 0x8000, scoped, tag = 'input window, operand 3, single buffered']
    #allocation8 [shape = 'u8[8192]{0}', space=vmem, size = 0x2000, scoped, tag = 'output window, operand 0, single buffered']
    %10 = vsyncpa [#allocation3], 0
    %11 = vsyncpa [#allocation6], 0
    %12 = vsyncpa [#allocation4], 0
    // Predicated region
    $region2: #{tpu_custom_call.1} parent=1 // pred_check
      _
    $region3: #{tpu_custom_call.1} parent=1 // pred_check_branch
      %14 = sbr.rel (0) target = $region5
    $region4: #{tpu_custom_call.1} parent=1 // pred_region
      %s16 = ssub.s32 128, 128
      %17 = vsyncadd [#allocation3], %s16
      %s18 = sshll.u32 [#allocation2], 4
      %s19 = int_to_ptr.vmem [resolvable:$true] %s18
      %24 = dma.hbm_to_vmem [thread:$0]  %s0, 128, %s19, [#allocation3], 64, 64, 4
    $region5: #{tpu_custom_call.1} parent=1 // pred_fallthru
      _
    // Predicated region
    $region6: #{tpu_custom_call.1} parent=1 // pred_check
      _
    $region7: #{tpu_custom_call.1} parent=1 // pred_check_branch
      %26 = sbr.rel (0) target = $region9
    $region8: #{tpu_custom_call.1} parent=1 // pred_region
      %s28 = ssub.s32 1024, 1024
      %29 = vsyncadd [#allocation6], %s28
      %s30 = sshll.u32 [#allocation5], 4
      %s31 = int_to_ptr.vmem [resolvable:$true] %s30
      %36 = dma.hbm_to_vmem [thread:$0]  %s1, 1024, %s31, [#allocation6], 64, 64, 4
    $region9: #{tpu_custom_call.1} parent=1 // pred_fallthru
      _
    // Predicated region
    $region10: #{tpu_custom_call.1} parent=1 // pred_check
      _
    $region11: #{tpu_custom_call.1} parent=1 // pred_check_branch
      %38 = sbr.rel (0) target = $region13
    $region12: #{tpu_custom_call.1} parent=1 // pred_region
      _
    $region13: #{tpu_custom_call.1} parent=1 // pred_fallthru
      _
    // Predicated region
    $region14: #{tpu_custom_call.1} parent=1 // pred_check
      _
    $region15: #{tpu_custom_call.1} parent=1 // pred_check_branch
      %40 = sbr.rel (0) target = $region17
    $region16: #{tpu_custom_call.1} parent=1 // pred_region
      %s42 = ssub.s32 1024, 1024
      %43 = vsyncadd [#allocation6], %s42
      %s44 = sshll.u32 [#allocation7], 4
      %s45 = int_to_ptr.vmem [resolvable:$true] %s44
      %50 = dma.hbm_to_vmem [thread:$0]  %s3, 1024, %s45, [#allocation6], 64, 64, 4
    $region17: #{tpu_custom_call.1} parent=1 // pred_fallthru
      _
    // Predicated region
    $region18: #{tpu_custom_call.1} parent=1 // pred_check
      _
    $region19: #{tpu_custom_call.1} parent=1 // pred_check_branch
      %52 = sbr.rel (0) target = $region21
    $region20: #{tpu_custom_call.1} parent=1 // pred_region
      _
    $region21: #{tpu_custom_call.1} parent=1 // pred_fallthru
      _
    // Predicated region
    $region22: #{tpu_custom_call.1} parent=1 // pred_check
      _
    $region23: #{tpu_custom_call.1} parent=1 // pred_check_branch
      %54 = sbr.rel (0) target = $region25
    $region24: #{tpu_custom_call.1} parent=1 // pred_region
      %55 = dma.done [#allocation3], 128
    $region25: #{tpu_custom_call.1} parent=1 // pred_fallthru
      _
    // Predicated region
    $region26: #{tpu_custom_call.1} parent=1 // pred_check
      _
    $region27: #{tpu_custom_call.1} parent=1 // pred_check_branch
      %57 = sbr.rel (0) target = $region29
    $region28: #{tpu_custom_call.1} parent=1 // pred_region
      %58 = dma.done [#allocation6], 1024
    $region29: #{tpu_custom_call.1} parent=1 // pred_fallthru
      _
    // Predicated region
    $region30: #{tpu_custom_call.1} parent=1 // pred_check
      _
    $region31: #{tpu_custom_call.1} parent=1 // pred_check_branch
      %60 = sbr.rel (0) target = $region33
    $region32: #{tpu_custom_call.1} parent=1 // pred_region
      %61 = dma.done [#allocation6], 1024
    $region33: #{tpu_custom_call.1} parent=1 // pred_fallthru
      _
    %v63 = vld [vmem:[#allocation2] sm:$0xf]
    %v64 = vld [vmem:[#allocation2 + $0x4] sm:$0xf]
    %v65 = vld [vmem:[#allocation5] sm:$0xf]
    %v66 = vld [vmem:[#allocation5 + $0x4] sm:$0xf]
    %v67 = vld [vmem:[#allocation5 + $0x8] sm:$0xf]
    %v68 = vld [vmem:[#allocation5 + $0xc] sm:$0xf]
    %v69 = vld [vmem:[#allocation5 + $0x10] sm:$0xf]
    %v70 = vld [vmem:[#allocation5 + $0x14] sm:$0xf]
    %v71 = vld [vmem:[#allocation5 + $0x18] sm:$0xf]
    %v72 = vld [vmem:[#allocation5 + $0x1c] sm:$0xf]
    %v73 = vld [vmem:[#allocation5 + $0x20] sm:$0xf]
    %v74 = vld [vmem:[#allocation5 + $0x24] sm:$0xf]
    %v75 = vld [vmem:[#allocation5 + $0x28] sm:$0xf]
    %v76 = vld [vmem:[#allocation5 + $0x2c] sm:$0xf]
    %v77 = vld [vmem:[#allocation5 + $0x30] sm:$0xf]
    %v78 = vld [vmem:[#allocation5 + $0x34] sm:$0xf]
    %v79 = vld [vmem:[#allocation5 + $0x38] sm:$0xf]
    %v80 = vld [vmem:[#allocation5 + $0x3c] sm:$0xf]
    %v81 = vld [vmem:[%s2] sm:$0x1]
    %v83 = vlaneseq
    %v84 = vshrl.u32 %v83, 7
    %v85 = vsub.s32 0, %v84
    %v86 = vrot.slane %v81, %v85
    %v90 = vunpack.c.l.b16 %v63
    %v91 = vunpack.c.l.b16 %v64
    %v92 = vpack.c.b16 %v91, %v90
    %v110 = vunpack.c.l.b16 %v65
    %v111 = vunpack.c.l.b16 %v66
    %v112 = vunpack.c.l.b16 %v67
    %v113 = vunpack.c.l.b16 %v68
    %v114 = vunpack.c.l.b16 %v69
    %v115 = vunpack.c.l.b16 %v70
    %v116 = vunpack.c.l.b16 %v71
    %v117 = vunpack.c.l.b16 %v72
    %v118 = vunpack.c.l.b16 %v73
    %v119 = vunpack.c.l.b16 %v74
    %v120 = vunpack.c.l.b16 %v75
    %v121 = vunpack.c.l.b16 %v76
    %v122 = vunpack.c.l.b16 %v77
    %v123 = vunpack.c.l.b16 %v78
    %v124 = vunpack.c.l.b16 %v79
    %v125 = vunpack.c.l.b16 %v80
    %v126 = vpack.c.b16 %v111, %v110
    %v127 = vpack.c.b16 %v113, %v112
    %v128 = vpack.c.b16 %v115, %v114
    %v129 = vpack.c.b16 %v117, %v116
    %v130 = vpack.c.b16 %v119, %v118
    %v131 = vpack.c.b16 %v121, %v120
    %v132 = vpack.c.b16 %v123, %v122
    %v133 = vpack.c.b16 %v125, %v124
    %142 = vmatprep.subr.bf16.mxu0 0
    %143 = vmatpush1.bf16.msra.mxu0 %v126
    %144 = vmatprep.subr.bf16.mxu0 0
    %145 = vmatpush1.bf16.msra.mxu0 %v127
    %146 = vmatprep.subr.bf16.mxu0 0
    %147 = vmatpush1.bf16.msra.mxu0 %v128
    %148 = vmatprep.subr.bf16.mxu0 0
    %149 = vmatpush1.bf16.msra.mxu0 %v129
    %150 = vmatprep.subr.bf16.mxu0 0
    %151 = vmatpush1.bf16.msra.mxu0 %v130
    %152 = vmatprep.subr.bf16.mxu0 0
    %153 = vmatpush1.bf16.msra.mxu0 %v131
    %154 = vmatprep.subr.bf16.mxu0 0
    %155 = vmatpush1.bf16.msra.mxu0 %v132
    %156 = vmatprep.subr.bf16.mxu0 0
    %157 = vmatpush1.bf16.msra.mxu0 %v133
    %158 = vmatprep.subr.bf16.mxu0 0
    %159 = vmatpush1.bf16.msra.mxu0 0
    %160 = vmatprep.subr.bf16.mxu0 0
    %161 = vmatpush1.bf16.msra.mxu0 0
    %162 = vmatprep.subr.bf16.mxu0 0
    %163 = vmatpush1.bf16.msra.mxu0 0
    %164 = vmatprep.subr.bf16.mxu0 0
    %165 = vmatpush1.bf16.msra.mxu0 0
    %166 = vmatprep.subr.bf16.mxu0 0
    %167 = vmatpush1.bf16.msra.mxu0 0
    %168 = vmatprep.subr.bf16.mxu0 0
    %169 = vmatpush1.bf16.msra.mxu0 0
    %170 = vmatprep.subr.bf16.mxu0 0
    %171 = vmatpush1.bf16.msra.mxu0 0
    %172 = vmatprep.subr.bf16.mxu0 0
    %173 = vmatpush1.bf16.msra.mxu0 0
    %174 = vmatprep.mubr.bf16.mxu0 0
    %175 = vmatmul.mubr.bf16.gmra.mrb[0].mxu0 %v92
    %v176 = vpop.f32.mrb[0].mxu0
    %v177 = vadd.f32 %v86, %v176
    %v178 = vpop.f32.mrb[0].mxu0
    %v179 = vpop.f32.mrb[0].mxu0
    %v180 = vadd.f32 %v86, %v179
    %v181 = vpop.f32.mrb[0].mxu0
    %182 = vdwg.mxu0
    %v183 = vmax.f32 %v177, 0.0
    %v184 = vmax.f32 %v180, 0.0
    %v185 = vpack.c.bf16 %v184, %v183
    %v186 = vld [vmem:[#allocation7] sm:$0xf]
    %v187 = vld [vmem:[#allocation7 + $0x4] sm:$0xf]
    %v188 = vld [vmem:[#allocation7 + $0x8] sm:$0xf]
    %v189 = vld [vmem:[#allocation7 + $0xc] sm:$0xf]
    %v190 = vld [vmem:[#allocation7 + $0x10] sm:$0xf]
    %v191 = vld [vmem:[#allocation7 + $0x14] sm:$0xf]
    %v192 = vld [vmem:[#allocation7 + $0x18] sm:$0xf]
    %v193 = vld [vmem:[#allocation7 + $0x1c] sm:$0xf]
    %v194 = vld [vmem:[#allocation7 + $0x20] sm:$0xf]
    %v195 = vld [vmem:[#allocation7 + $0x24] sm:$0xf]
    %v196 = vld [vmem:[#allocation7 + $0x28] sm:$0xf]
    %v197 = vld [vmem:[#allocation7 + $0x2c] sm:$0xf]
    %v198 = vld [vmem:[#allocation7 + $0x30] sm:$0xf]
    %v199 = vld [vmem:[#allocation7 + $0x34] sm:$0xf]
    %v200 = vld [vmem:[#allocation7 + $0x38] sm:$0xf]
    %v201 = vld [vmem:[#allocation7 + $0x3c] sm:$0xf]
    %v202 = vld [vmem:[%s4] sm:$0x1]
    %v204 = vlaneseq
    %v205 = vshrl.u32 %v204, 7
    %v206 = vsub.s32 0, %v205
    %v207 = vrot.slane %v202, %v206
    %v225 = vunpack.c.l.b16 %v186
    %v226 = vunpack.c.l.b16 %v187
    %v227 = vunpack.c.l.b16 %v188
    %v228 = vunpack.c.l.b16 %v189
    %v229 = vunpack.c.l.b16 %v190
    %v230 = vunpack.c.l.b16 %v191
    %v231 = vunpack.c.l.b16 %v192
    %v232 = vunpack.c.l.b16 %v193
    %v233 = vunpack.c.l.b16 %v194
    %v234 = vunpack.c.l.b16 %v195
    %v235 = vunpack.c.l.b16 %v196
    %v236 = vunpack.c.l.b16 %v197
    %v237 = vunpack.c.l.b16 %v198
    %v238 = vunpack.c.l.b16 %v199
    %v239 = vunpack.c.l.b16 %v200
    %v240 = vunpack.c.l.b16 %v201
    %v241 = vpack.c.b16 %v226, %v225
    %v242 = vpack.c.b16 %v228, %v227
    %v243 = vpack.c.b16 %v230, %v229
    %v244 = vpack.c.b16 %v232, %v231
    %v245 = vpack.c.b16 %v234, %v233
    %v246 = vpack.c.b16 %v236, %v235
    %v247 = vpack.c.b16 %v238, %v237
    %v248 = vpack.c.b16 %v240, %v239
    %257 = vmatprep.subr.bf16.mxu0 0
    %258 = vmatpush1.bf16.msra.mxu0 %v241
    %259 = vmatprep.subr.bf16.mxu0 0
    %260 = vmatpush1.bf16.msra.mxu0 %v242
    %261 = vmatprep.subr.bf16.mxu0 0
    %262 = vmatpush1.bf16.msra.mxu0 %v243
    %263 = vmatprep.subr.bf16.mxu0 0
    %264 = vmatpush1.bf16.msra.mxu0 %v244
    %265 = vmatprep.subr.bf16.mxu0 0
    %266 = vmatpush1.bf16.msra.mxu0 %v245
    %267 = vmatprep.subr.bf16.mxu0 0
    %268 = vmatpush1.bf16.msra.mxu0 %v246
    %269 = vmatprep.subr.bf16.mxu0 0
    %270 = vmatpush1.bf16.msra.mxu0 %v247
    %271 = vmatprep.subr.bf16.mxu0 0
    %272 = vmatpush1.bf16.msra.mxu0 %v248
    %273 = vmatprep.subr.bf16.mxu0 0
    %274 = vmatpush1.bf16.msra.mxu0 0
    %275 = vmatprep.subr.bf16.mxu0 0
    %276 = vmatpush1.bf16.msra.mxu0 0
    %277 = vmatprep.subr.bf16.mxu0 0
    %278 = vmatpush1.bf16.msra.mxu0 0
    %279 = vmatprep.subr.bf16.mxu0 0
    %280 = vmatpush1.bf16.msra.mxu0 0
    %281 = vmatprep.subr.bf16.mxu0 0
    %282 = vmatpush1.bf16.msra.mxu0 0
    %283 = vmatprep.subr.bf16.mxu0 0
    %284 = vmatpush1.bf16.msra.mxu0 0
    %285 = vmatprep.subr.bf16.mxu0 0
    %286 = vmatpush1.bf16.msra.mxu0 0
    %287 = vmatprep.subr.bf16.mxu0 0
    %288 = vmatpush1.bf16.msra.mxu0 0
    %289 = vmatprep.mubr.bf16.mxu0 0
    %290 = vmatmul.mubr.bf16.gmra.mrb[0].mxu0 %v185
    %v291 = vpop.f32.mrb[0].mxu0
    %v292 = vadd.f32 %v207, %v291
    %v293 = vpop.f32.mrb[0].mxu0
    %v294 = vpop.f32.mrb[0].mxu0
    %v295 = vadd.f32 %v207, %v294
    %v296 = vpop.f32.mrb[0].mxu0
    %297 = vdwg.mxu0
    %298 = vst [vmem:[#allocation8] sm:$0xff] %v292
    %299 = vst [vmem:[#allocation8 + $0x8] sm:$0xff] %v295
    // Predicated region
    $region34: #{tpu_custom_call.1} parent=1 // pred_check
      _
    $region35: #{tpu_custom_call.1} parent=1 // pred_check_branch
      %301 = sbr.rel (0) target = $region37
    $region36: #{tpu_custom_call.1} parent=1 // pred_region
      %s303 = ssub.s32 256, 256
      %304 = vsyncadd [#allocation4], %s303
      %s305 = sshll.u32 [#allocation8], 4
      %s306 = int_to_ptr.vmem [resolvable:$true] %s305
      %311 = dma.vmem_to_hbm [thread:$0]  %s306, 256, %s5, [#allocation4], 128, 128, 8
    $region37: #{tpu_custom_call.1} parent=1 // pred_fallthru
      _
    // Predicated region
    $region38: #{tpu_custom_call.1} parent=1 // pred_check
      _
    $region39: #{tpu_custom_call.1} parent=1 // pred_check_branch
      %313 = sbr.rel (0) target = $region41
    $region40: #{tpu_custom_call.1} parent=1 // pred_region
      %314 = dma.done [#allocation4], 256
    $region41: #{tpu_custom_call.1} parent=1 // pred_fallthru
      _
    %315 = vsyncpa [#allocation3], 1
    %316 = vsyncpa [#allocation6], 1
    %317 = vsyncpa [#allocation4], 1

// kernel: tpu_custom_call.1
$region0: #{tpu_custom_call.1}
  #allocation0 [shape = 'u32[]', space=smem, size = 0x4, offset = 0x4, fixed_abs, tag = 'smem constant byte address 0x4 - core index']
  #allocation1 [shape = 'u32[144,128]{1,0:T(1,128)}', space=vmem, size = 0x12000, scoped, tag = 'internal scratch']
  %s0 = inlined_call_operand.hbm [shape: bf16[16,128], index: 0, kind: input, shape index: {}]
  %s1 = inlined_call_operand.hbm [shape: bf16[128,128], index: 1, kind: input, shape index: {}]
  %s2 = inlined_call_operand.vmem [shape: f32[1,128], index: 2, kind: input, shape index: {}]
  %s3 = inlined_call_operand.hbm [shape: bf16[128,128], index: 3, kind: input, shape index: {}]
  %s4 = inlined_call_operand.vmem [shape: f32[1,128], index: 4, kind: input, shape index: {}]
  %s5 = inlined_call_operand.hbm [shape: f32[16,128], index: 5, kind: output, shape index: {}]
  %s6 = sld [smem:[#allocation0]]
  $region42: #{tpu_custom_call.1} parent=0
    _
  %s8 = ssub.s32 1, %s6
  %s9 = scalar_select 0, %s8, %s6
  $region1: #{tpu_custom_call.1} parent=0
    #allocation2 [shape = 'u8[4096]{0}', space=vmem, size = 0x1000, scoped, tag = 'input window, operand 0, single buffered']
    #allocation3 [shape = 's32[1]{0}', space=sflag, size = 0x4, scoped, tag = 'scoped memory for tpu_custom_call.1']
    #allocation4 [shape = 's32[1]{0}', space=sflag, size = 0x4, scoped, tag = 'scoped memory for tpu_custom_call.1']
    #allocation5 [shape = 'u8[32768]{0}', space=vmem, size = 0x8000, scoped, tag = 'input window, operand 1, single buffered']
    #allocation6 [shape = 's32[1]{0}', space=sflag, size = 0x4, scoped, tag = 'scoped memory for tpu_custom_call.1']
    #allocation7 [shape = 'u8[32768]{0}', space=vmem, size = 0x8000, scoped, tag = 'input window, operand 3, single buffered']
    #allocation8 [shape = 'u8[8192]{0}', space=vmem, size = 0x2000, scoped, tag = 'output window, operand 0, single buffered']
    %10 = vsyncpa [#allocation3], 0
    %11 = vsyncpa [#allocation6], 0
    %12 = vsyncpa [#allocation4], 0
    // Predicated region
    $region2: #{tpu_custom_call.1} parent=1 // pred_check
      _
    $region3: #{tpu_custom_call.1} parent=1 // pred_check_branch
      %14 = sbr.rel (0) target = $region5
    $region4: #{tpu_custom_call.1} parent=1 // pred_region
      %s16 = ssub.s32 128, 128
      %17 = vsyncadd [#allocation3], %s16
      %s18 = sshll.u32 [#allocation2], 4
      %s19 = int_to_ptr.vmem [resolvable:$true] %s18
      %24 = dma.hbm_to_vmem [thread:$0]  %s0, 128, %s19, [#allocation3], 64, 64, 4
    $region5: #{tpu_custom_call.1} parent=1 // pred_fallthru
      _
    // Predicated region
    $region6: #{tpu_custom_call.1} parent=1 // pred_check
      _
    $region7: #{tpu_custom_call.1} parent=1 // pred_check_branch
      %26 = sbr.rel (0) target = $region9
    $region8: #{tpu_custom_call.1} parent=1 // pred_region
      %s28 = ssub.s32 1024, 1024
      %29 = vsyncadd [#allocation6], %s28
      %s30 = sshll.u32 [#allocation5], 4
      %s31 = int_to_ptr.vmem [resolvable:$true] %s30
      %36 = dma.hbm_to_vmem [thread:$0]  %s1, 1024, %s31, [#allocation6], 64, 64, 4
    $region9: #{tpu_custom_call.1} parent=1 // pred_fallthru
      _
    // Predicated region
    $region10: #{tpu_custom_call.1} parent=1 // pred_check
      _
    $region11: #{tpu_custom_call.1} parent=1 // pred_check_branch
      %38 = sbr.rel (0) target = $region13
    $region12: #{tpu_custom_call.1} parent=1 // pred_region
      _
    $region13: #{tpu_custom_call.1} parent=1 // pred_fallthru
      _
    // Predicated region
    $region14: #{tpu_custom_call.1} parent=1 // pred_check
      _
    $region15: #{tpu_custom_call.1} parent=1 // pred_check_branch
      %40 = sbr.rel (0) target = $region17
    $region16: #{tpu_custom_call.1} parent=1 // pred_region
      %s42 = ssub.s32 1024, 1024
      %43 = vsyncadd [#allocation6], %s42
      %s44 = sshll.u32 [#allocation7], 4
      %s45 = int_to_ptr.vmem [resolvable:$true] %s44
      %50 = dma.hbm_to_vmem [thread:$0]  %s3, 1024, %s45, [#allocation6], 64, 64, 4
    $region17: #{tpu_custom_call.1} parent=1 // pred_fallthru
      _
    // Predicated region
    $region18: #{tpu_custom_call.1} parent=1 // pred_check
      _
    $region19: #{tpu_custom_call.1} parent=1 // pred_check_branch
      %52 = sbr.rel (0) target = $region21
    $region20: #{tpu_custom_call.1} parent=1 // pred_region
      _
    $region21: #{tpu_custom_call.1} parent=1 // pred_fallthru
      _
    // Predicated region
    $region22: #{tpu_custom_call.1} parent=1 // pred_check
      _
    $region23: #{tpu_custom_call.1} parent=1 // pred_check_branch
      %54 = sbr.rel (0) target = $region25
    $region24: #{tpu_custom_call.1} parent=1 // pred_region
      %55 = dma.done [#allocation3], 128
    $region25: #{tpu_custom_call.1} parent=1 // pred_fallthru
      _
    // Predicated region
    $region26: #{tpu_custom_call.1} parent=1 // pred_check
      _
    $region27: #{tpu_custom_call.1} parent=1 // pred_check_branch
      %57 = sbr.rel (0) target = $region29
    $region28: #{tpu_custom_call.1} parent=1 // pred_region
      %58 = dma.done [#allocation6], 1024
    $region29: #{tpu_custom_call.1} parent=1 // pred_fallthru
      _
    // Predicated region
    $region30: #{tpu_custom_call.1} parent=1 // pred_check
      _
    $region31: #{tpu_custom_call.1} parent=1 // pred_check_branch
      %60 = sbr.rel (0) target = $region33
    $region32: #{tpu_custom_call.1} parent=1 // pred_region
      %61 = dma.done [#allocation6], 1024
    $region33: #{tpu_custom_call.1} parent=1 // pred_fallthru
      _
    %v63 = vld [vmem:[#allocation2] sm:$0xf]
    %v64 = vld [vmem:[#allocation2 + $0x4] sm:$0xf]
    %v65 = vld [vmem:[#allocation5] sm:$0xf]
    %v66 = vld [vmem:[#allocation5 + $0x4] sm:$0xf]
    %v67 = vld [vmem:[#allocation5 + $0x8] sm:$0xf]
    %v68 = vld [vmem:[#allocation5 + $0xc] sm:$0xf]
    %v69 = vld [vmem:[#allocation5 + $0x10] sm:$0xf]
    %v70 = vld [vmem:[#allocation5 + $0x14] sm:$0xf]
    %v71 = vld [vmem:[#allocation5 + $0x18] sm:$0xf]
    %v72 = vld [vmem:[#allocation5 + $0x1c] sm:$0xf]
    %v73 = vld [vmem:[#allocation5 + $0x20] sm:$0xf]
    %v74 = vld [vmem:[#allocation5 + $0x24] sm:$0xf]
    %v75 = vld [vmem:[#allocation5 + $0x28] sm:$0xf]
    %v76 = vld [vmem:[#allocation5 + $0x2c] sm:$0xf]
    %v77 = vld [vmem:[#allocation5 + $0x30] sm:$0xf]
    %v78 = vld [vmem:[#allocation5 + $0x34] sm:$0xf]
    %v79 = vld [vmem:[#allocation5 + $0x38] sm:$0xf]
    %v80 = vld [vmem:[#allocation5 + $0x3c] sm:$0xf]
    %v81 = vld [vmem:[%s2] sm:$0x1]
    %v83 = vlaneseq
    %v84 = vshrl.u32 %v83, 7
    %v85 = vsub.s32 0, %v84
    %v86 = vrot.slane %v81, %v85
    %v90 = vunpack.c.l.b16 %v63
    %v91 = vunpack.c.l.b16 %v64
    %v92 = vpack.c.b16 %v91, %v90
    %v110 = vunpack.c.l.b16 %v65
    %v111 = vunpack.c.l.b16 %v66
    %v112 = vunpack.c.l.b16 %v67
    %v113 = vunpack.c.l.b16 %v68
    %v114 = vunpack.c.l.b16 %v69
    %v115 = vunpack.c.l.b16 %v70
    %v116 = vunpack.c.l.b16 %v71
    %v117 = vunpack.c.l.b16 %v72
    %v118 = vunpack.c.l.b16 %v73
    %v119 = vunpack.c.l.b16 %v74
    %v120 = vunpack.c.l.b16 %v75
    %v121 = vunpack.c.l.b16 %v76
    %v122 = vunpack.c.l.b16 %v77
    %v123 = vunpack.c.l.b16 %v78
    %v124 = vunpack.c.l.b16 %v79
    %v125 = vunpack.c.l.b16 %v80
    %v126 = vpack.c.b16 %v111, %v110
    %v127 = vpack.c.b16 %v113, %v112
    %v128 = vpack.c.b16 %v115, %v114
    %v129 = vpack.c.b16 %v117, %v116
    %v130 = vpack.c.b16 %v119, %v118
    %v131 = vpack.c.b16 %v121, %v120
    %v132 = vpack.c.b16 %v123, %v122
    %v133 = vpack.c.b16 %v125, %v124
    %142 = vmatprep.subr.bf16.mxu0 0
    %143 = vmatpush1.bf16.msra.mxu0 %v126
    %144 = vmatprep.subr.bf16.mxu0 0
    %145 = vmatpush1.bf16.msra.mxu0 %v127
    %146 = vmatprep.subr.bf16.mxu0 0
    %147 = vmatpush1.bf16.msra.mxu0 %v128
    %148 = vmatprep.subr.bf16.mxu0 0
    %149 = vmatpush1.bf16.msra.mxu0 %v129
    %150 = vmatprep.subr.bf16.mxu0 0
    %151 = vmatpush1.bf16.msra.mxu0 %v130
    %152 = vmatprep.subr.bf16.mxu0 0
    %153 = vmatpush1.bf16.msra.mxu0 %v131
    %154 = vmatprep.subr.bf16.mxu0 0
    %155 = vmatpush1.bf16.msra.mxu0 %v132
    %156 = vmatprep.subr.bf16.mxu0 0
    %157 = vmatpush1.bf16.msra.mxu0 %v133
    %158 = vmatprep.subr.bf16.mxu0 0
    %159 = vmatpush1.bf16.msra.mxu0 0
    %160 = vmatprep.subr.bf16.mxu0 0
    %161 = vmatpush1.bf16.msra.mxu0 0
    %162 = vmatprep.subr.bf16.mxu0 0
    %163 = vmatpush1.bf16.msra.mxu0 0
    %164 = vmatprep.subr.bf16.mxu0 0
    %165 = vmatpush1.bf16.msra.mxu0 0
    %166 = vmatprep.subr.bf16.mxu0 0
    %167 = vmatpush1.bf16.msra.mxu0 0
    %168 = vmatprep.subr.bf16.mxu0 0
    %169 = vmatpush1.bf16.msra.mxu0 0
    %170 = vmatprep.subr.bf16.mxu0 0
    %171 = vmatpush1.bf16.msra.mxu0 0
    %172 = vmatprep.subr.bf16.mxu0 0
    %173 = vmatpush1.bf16.msra.mxu0 0
    %174 = vmatprep.mubr.bf16.mxu0 0
    %175 = vmatmul.mubr.bf16.gmra.mrb[0].mxu0 %v92
    %v176 = vpop.f32.mrb[0].mxu0
    %v177 = vadd.f32 %v86, %v176
    %v178 = vpop.f32.mrb[0].mxu0
    %v179 = vpop.f32.mrb[0].mxu0
    %v180 = vadd.f32 %v86, %v179
    %v181 = vpop.f32.mrb[0].mxu0
    %182 = vdwg.mxu0
    %v183 = vmax.f32 %v177, 0.0
    %v184 = vmax.f32 %v180, 0.0
    %v185 = vpack.c.bf16 %v184, %v183
    %v186 = vld [vmem:[#allocation7] sm:$0xf]
    %v187 = vld [vmem:[#allocation7 + $0x4] sm:$0xf]
    %v188 = vld [vmem:[#allocation7 + $0x8] sm:$0xf]
    %v189 = vld [vmem:[#allocation7 + $0xc] sm:$0xf]
    %v190 = vld [vmem:[#allocation7 + $0x10] sm:$0xf]
    %v191 = vld [vmem:[#allocation7 + $0x14] sm:$0xf]
    %v192 = vld [vmem:[#allocation7 + $0x18] sm:$0xf]
    %v193 = vld [vmem:[#allocation7 + $0x1c] sm:$0xf]
    %v194 = vld [vmem:[#allocation7 + $0x20] sm:$0xf]
    %v195 = vld [vmem:[#allocation7 + $0x24] sm:$0xf]
    %v196 = vld [vmem:[#allocation7 + $0x28] sm:$0xf]
    %v197 = vld [vmem:[#allocation7 + $0x2c] sm:$0xf]
    %v198 = vld [vmem:[#allocation7 + $0x30] sm:$0xf]
    %v199 = vld [vmem:[#allocation7 + $0x34] sm:$0xf]
    %v200 = vld [vmem:[#allocation7 + $0x38] sm:$0xf]
    %v201 = vld [vmem:[#allocation7 + $0x3c] sm:$0xf]
    %v202 = vld [vmem:[%s4] sm:$0x1]
    %v204 = vlaneseq
    %v205 = vshrl.u32 %v204, 7
    %v206 = vsub.s32 0, %v205
    %v207 = vrot.slane %v202, %v206
    %v225 = vunpack.c.l.b16 %v186
    %v226 = vunpack.c.l.b16 %v187
    %v227 = vunpack.c.l.b16 %v188
    %v228 = vunpack.c.l.b16 %v189
    %v229 = vunpack.c.l.b16 %v190
    %v230 = vunpack.c.l.b16 %v191
    %v231 = vunpack.c.l.b16 %v192
    %v232 = vunpack.c.l.b16 %v193
    %v233 = vunpack.c.l.b16 %v194
    %v234 = vunpack.c.l.b16 %v195
    %v235 = vunpack.c.l.b16 %v196
    %v236 = vunpack.c.l.b16 %v197
    %v237 = vunpack.c.l.b16 %v198
    %v238 = vunpack.c.l.b16 %v199
    %v239 = vunpack.c.l.b16 %v200
    %v240 = vunpack.c.l.b16 %v201
    %v241 = vpack.c.b16 %v226, %v225
    %v242 = vpack.c.b16 %v228, %v227
    %v243 = vpack.c.b16 %v230, %v229
    %v244 = vpack.c.b16 %v232, %v231
    %v245 = vpack.c.b16 %v234, %v233
    %v246 = vpack.c.b16 %v236, %v235
    %v247 = vpack.c.b16 %v238, %v237
    %v248 = vpack.c.b16 %v240, %v239
    %257 = vmatprep.subr.bf16.mxu0 0
    %258 = vmatpush1.bf16.msra.mxu0 %v241
    %259 = vmatprep.subr.bf16.mxu0 0
    %260 = vmatpush1.bf16.msra.mxu0 %v242
    %261 = vmatprep.subr.bf16.mxu0 0
    %262 = vmatpush1.bf16.msra.mxu0 %v243
    %263 = vmatprep.subr.bf16.mxu0 0
    %264 = vmatpush1.bf16.msra.mxu0 %v244
    %265 = vmatprep.subr.bf16.mxu0 0
    %266 = vmatpush1.bf16.msra.mxu0 %v245
    %267 = vmatprep.subr.bf16.mxu0 0
    %268 = vmatpush1.bf16.msra.mxu0 %v246
    %269 = vmatprep.subr.bf16.mxu0 0
    %270 = vmatpush1.bf16.msra.mxu0 %v247
    %271 = vmatprep.subr.bf16.mxu0 0
    %272 = vmatpush1.bf16.msra.mxu0 %v248
    %273 = vmatprep.subr.bf16.mxu0 0
    %274 = vmatpush1.bf16.msra.mxu0 0
    %275 = vmatprep.subr.bf16.mxu0 0
    %276 = vmatpush1.bf16.msra.mxu0 0
    %277 = vmatprep.subr.bf16.mxu0 0
    %278 = vmatpush1.bf16.msra.mxu0 0
    %279 = vmatprep.subr.bf16.mxu0 0
    %280 = vmatpush1.bf16.msra.mxu0 0
    %281 = vmatprep.subr.bf16.mxu0 0
    %282 = vmatpush1.bf16.msra.mxu0 0
    %283 = vmatprep.subr.bf16.mxu0 0
    %284 = vmatpush1.bf16.msra.mxu0 0
    %285 = vmatprep.subr.bf16.mxu0 0
    %286 = vmatpush1.bf16.msra.mxu0 0
    %287 = vmatprep.subr.bf16.mxu0 0
    %288 = vmatpush1.bf16.msra.mxu0 0
    %289 = vmatprep.mubr.bf16.mxu0 0
    %290 = vmatmul.mubr.bf16.gmra.mrb[0].mxu0 %v185
    %v291 = vpop.f32.mrb[0].mxu0
    %v292 = vadd.f32 %v207, %v291
    %v293 = vpop.f32.mrb[0].mxu0
    %v294 = vpop.f32.mrb[0].mxu0
    %v295 = vadd.f32 %v207, %v294
    %v296 = vpop.f32.mrb[0].mxu0
    %297 = vdwg.mxu0
    %298 = vst [vmem:[#allocation8] sm:$0xff] %v292
    %299 = vst [vmem:[#allocation8 + $0x8] sm:$0xff] %v295
    // Predicated region
    $region34: #{tpu_custom_call.1} parent=1 // pred_check
      _
    $region35: #{tpu_custom_call.1} parent=1 // pred_check_branch
      %301 = sbr.rel (0) target = $region37
    $region36: #{tpu_custom_call.1} parent=1 // pred_region
      %s303 = ssub.s32 256, 256
      %304 = vsyncadd [#allocation4], %s303
      %s305 = sshll.u32 [#allocation8], 4
      %s306 = int_to_ptr.vmem [resolvable:$true] %s305
      %311 = dma.vmem_to_hbm [thread:$0]  %s306, 256, %s5, [#allocation4], 128, 128, 8
    $region37: #{tpu_custom_call.1} parent=1 // pred_fallthru
      _
    // Predicated region
    $region38: #{tpu_custom_call.1} parent=1 // pred_check
      _
    $region39: #{tpu_custom_call.1} parent=1 // pred_check_branch
      %313 = sbr.rel (0) target = $region41
    $region40: #{tpu_custom_call.1} parent=1 // pred_region
      %314 = dma.done [#allocation4], 256
    $region41: #{tpu_custom_call.1} parent=1 // pred_fallthru
      _
    %315 = vsyncpa [#allocation3], 1
    %316 = vsyncpa [#allocation6], 1
    %317 = vsyncpa [#allocation4], 1

</llo_original>
